<compile_context>
chip_gen: v7x
topology: tpu7x:2x2x1
jax: 0.10.0
libtpu: 0.0.40
codegen_flags: <defaults>
</compile_context>

<pallas_src>
import math

import jax
import jax.numpy as jnp
from jax.experimental import pallas as pl
from jax.experimental.pallas import tpu as pltpu

TWO_PI = 2.0 * math.pi


def fourier_kernel(x_ref, b_ref, p_ref, a_ref, o_ref):
    # x: [TB, D]; b/p/a: [1, D*2F] (VMEM-resident); o: [TB, D*2F] (lane-dense)
    x = x_ref[...]
    tb, d_in = x.shape
    width = o_ref.shape[1]
    two_f = width // d_in

    # Replicate each input feature across its 2F output columns (d-major order):
    # per-feature lane broadcast + one lane-concat.  This is XLU/VPU work that hides
    # under the EUP sin (the binding unit); no reshape, no masked partial stores.
    # NOTE: trace-time unroll is O(input_size); fine for typical encoder sizes.
    if d_in == 1:
        xr = jnp.broadcast_to(x, (tb, width))
    else:
        xr = jnp.concatenate(
            [jnp.broadcast_to(x[:, d:d + 1], (tb, two_f)) for d in range(d_in)],
            axis=1,
        )                                                # [TB, D*2F]

    # Folded params:  b = 2*pi*w*scale*B ;  p = 2*pi*bias*B + phi (+pi/2 for the cos half)
    ang = xr * b_ref[...] + p_ref[...]
    o_ref[...] = (a_ref[...] * jnp.sin(ang)).astype(o_ref.dtype)


def fourier_encoder(x, scale_param, conv_w, conv_b, B_freq, phi, amplitude,
                    feature_scaling, *, block_batch=None, out_dtype=jnp.float32):
    """Matches FourierEncoder.forward with defaults (kernel_size=1, activation='sin_cos')."""
    # TODO(synk): Conv1d with kernel_size > 1 (zero-padded along the feature axis) and the
    #             non-default activations ('sin', 'cos', 'tanh') are not implemented; only
    #             the module's default configuration is supported.
    x = x.astype(jnp.float32)
    bsz, d_in = x.shape
    n_feat = B_freq.shape[1]
    width = d_in * 2 * n_feat

    w = jnp.asarray(conv_w, jnp.float32).reshape(())
    b = jnp.asarray(conv_b, jnp.float32).reshape(())
    scale = scale_param.astype(jnp.float32).reshape(d_in, 1)
    b_f32 = B_freq.astype(jnp.float32)

    # Fold scale_input + Conv1d(k=1) affine + 2*pi into the per-feature params:
    #   2*pi*(w*(scale*x) + b)*B + phi  ==  x * (2*pi*w*scale*B) + (2*pi*b*B + phi)
    b_eff = (TWO_PI * w) * scale * b_f32                              # [D, F]
    p_eff = (TWO_PI * b) * b_f32 + phi.astype(jnp.float32)            # [D, F]

    # Fold cos into sin (cos(z) = sin(z + pi/2)), pre-multiply amplitude * feature_scaling,
    # and flatten everything in torch's cat([sin, cos], dim=2).view(B, -1) order.
    amp = amplitude.astype(jnp.float32)
    b_flat = jnp.concatenate([b_eff, b_eff], axis=1).reshape(1, width)
    p_flat = jnp.concatenate([p_eff, p_eff + 0.5 * math.pi], axis=1).reshape(1, width)
    a_flat = (jnp.concatenate([amp, amp], axis=1)
              * feature_scaling.astype(jnp.float32)).reshape(1, width)

    # Batch tile: multiple of 8 sublanes when possible, capped so (x + out) tiles
    # (double-buffered) stay comfortably inside the VMEM budget.
    if block_batch is None:
        per_row_bytes = 4 * (d_in + width)
        cap = max(8, (4 * 1024 * 1024) // max(per_row_bytes, 1))
        block_batch = min(bsz, min(1024, cap))
        if block_batch >= 8:
            block_batch -= block_batch % 8
    tb = max(1, min(block_batch, bsz))
    grid = (pl.cdiv(bsz, tb),)

    cost = pl.CostEstimate(
        flops=3 * bsz * width,                 # mul + add + amplitude-mul per output element
        transcendentals=bsz * width,           # one sin per output element (EUP-bound)
        bytes_accessed=4 * (bsz * d_in + 3 * width + bsz * width),
    )

    out = pl.pallas_call(
        fourier_kernel,
        grid=grid,
        in_specs=[
            pl.BlockSpec((tb, d_in), lambda i: (i, 0)),     # batch tile of x
            pl.BlockSpec((1, width), lambda i: (0, 0)),     # B_flat   (resident)
            pl.BlockSpec((1, width), lambda i: (0, 0)),     # phi_flat (resident)
            pl.BlockSpec((1, width), lambda i: (0, 0)),     # A_flat   (resident)
        ],
        out_specs=pl.BlockSpec((tb, width), lambda i: (i, 0)),
        out_shape=jax.ShapeDtypeStruct((bsz, width), out_dtype),
        compiler_params=pltpu.CompilerParams(
            dimension_semantics=("parallel",),              # megacore sharding
            vmem_limit_bytes=32 * 1024 * 1024,              # safe on v5e/v6e/v7x
        ),
        cost_estimate=cost,
    )(x, b_flat, p_flat, a_flat)

    return out  # already [B, D*2F] in torch's flattened order; no reshape needed


def reference(x, scale_param, conv_w, conv_b, B_freq, phi, amplitude, feature_scaling):
    # Plain-JAX mirror of the torch forward (unfolded math).
    x = x * scale_param[None, :]
    x = x * conv_w + conv_b
    proj = TWO_PI * x[:, :, None] * B_freq[None, :, :] + phi[None, :, :]
    s = amplitude[None, :, :] * jnp.sin(proj)
    c = amplitude[None, :, :] * jnp.cos(proj)
    f = jnp.concatenate([s, c], axis=2) * feature_scaling[None, :, :]
    return f.reshape(x.shape[0], -1)


if __name__ == "__main__":
    # Small shapes consistent with the module: x is [batch_size, input_size]
    batch_size = 16
    input_size = 4
    num_features_per_input = 8
    rff_sigma = 1.0

    key = jax.random.PRNGKey(0)
    kx, kB, kw, kb, ks, kp, ka, kf = jax.random.split(key, 8)

    x = jax.random.normal(kx, (batch_size, input_size), dtype=jnp.float32)

    # RFF buffer B ~ N(0, 1/sigma); Conv1d(1,1,k=1) weight/bias uniform in [-1, 1].
    # Learnable params perturbed slightly from their default init so the folding
    # (amp*fs, +pi/2 cos phase, scale/conv absorption) is actually exercised.
    B_freq = (1.0 / rff_sigma) * jax.random.normal(
        kB, (input_size, num_features_per_input), dtype=jnp.float32)
    scale_param = 1.0 + 0.1 * jax.random.normal(ks, (input_size,), dtype=jnp.float32)
    phi = 0.1 * jax.random.normal(kp, (input_size, num_features_per_input), dtype=jnp.float32)
    amplitude = 1.0 + 0.1 * jax.random.normal(
        ka, (input_size, num_features_per_input), dtype=jnp.float32)
    feature_scaling = 1.0 + 0.1 * jax.random.normal(
        kf, (input_size, 2 * num_features_per_input), dtype=jnp.float32)
    conv_w = jax.random.uniform(kw, (), minval=-1.0, maxval=1.0, dtype=jnp.float32)
    conv_b = jax.random.uniform(kb, (), minval=-1.0, maxval=1.0, dtype=jnp.float32)

    out = fourier_encoder(x, scale_param, conv_w, conv_b, B_freq, phi,
                          amplitude, feature_scaling, block_batch=8)
    out = jax.block_until_ready(out)

    ref = reference(x, scale_param, conv_w, conv_b, B_freq, phi, amplitude, feature_scaling)
    assert out.shape == (batch_size, input_size * 2 * num_features_per_input), out.shape
    max_err = float(jnp.max(jnp.abs(out - ref)))
    # Slightly relaxed atol: folding the affine pre-transform into B/phi reassociates a few
    # f32 ops in the sin argument (angles up to ~tens), giving ~1e-5-level differences.
    assert jnp.allclose(out, ref, atol=5e-5, rtol=1e-5), max_err

    print("KERNEL_OK")
</pallas_src>

<mosaic_0001>
module attributes {stable_mosaic.version = 11 : i64} {
  func.func @fourier_kernel(%arg0: i32, %arg1: memref<8x4xf32, #tpu.memory_space<vmem>>, %arg2: memref<1x64xf32, #tpu.memory_space<vmem>>, %arg3: memref<1x64xf32, #tpu.memory_space<vmem>>, %arg4: memref<1x64xf32, #tpu.memory_space<vmem>>, %arg5: memref<8x64xf32, #tpu.memory_space<vmem>>) attributes {dimension_semantics = [#tpu.dimension_semantics<parallel>], iteration_bounds = array<i64: 2>, scalar_prefetch = 0 : i64, scratch_operands = 0 : i64, tpu.core_type = #tpu.core_type<tc>, window_params = [{transform_indices = @transform_0, window_bounds = array<i64: 8, 4>}, {pipeline_mode = #tpu.pipeline_mode<synchronous>, transform_indices = @transform_1, window_bounds = array<i64: 1, 64>}, {pipeline_mode = #tpu.pipeline_mode<synchronous>, transform_indices = @transform_2, window_bounds = array<i64: 1, 64>}, {pipeline_mode = #tpu.pipeline_mode<synchronous>, transform_indices = @transform_3, window_bounds = array<i64: 1, 64>}, {transform_indices = @transform_4, window_bounds = array<i64: 8, 64>}]} {
    %c0 = arith.constant 0 : index
    %c0_0 = arith.constant 0 : index
    %0 = vector.load %arg1[%c0, %c0_0] : memref<8x4xf32, #tpu.memory_space<vmem>>, vector<8x4xf32>
    %1 = vector.extract_strided_slice %0 {offsets = [0, 0], sizes = [8, 1], strides = [1, 1]} : vector<8x4xf32> to vector<8x1xf32>
    %2 = vector.shape_cast %1 : vector<8x1xf32> to vector<8x1xf32>
    %3 = vector.broadcast %2 : vector<8x1xf32> to vector<8x16xf32>
    %4 = vector.extract_strided_slice %0 {offsets = [0, 1], sizes = [8, 1], strides = [1, 1]} : vector<8x4xf32> to vector<8x1xf32>
    %5 = vector.shape_cast %4 : vector<8x1xf32> to vector<8x1xf32>
    %6 = vector.broadcast %5 : vector<8x1xf32> to vector<8x16xf32>
    %7 = vector.extract_strided_slice %0 {offsets = [0, 2], sizes = [8, 1], strides = [1, 1]} : vector<8x4xf32> to vector<8x1xf32>
    %8 = vector.shape_cast %7 : vector<8x1xf32> to vector<8x1xf32>
    %9 = vector.broadcast %8 : vector<8x1xf32> to vector<8x16xf32>
    %10 = vector.extract_strided_slice %0 {offsets = [0, 3], sizes = [8, 1], strides = [1, 1]} : vector<8x4xf32> to vector<8x1xf32>
    %11 = vector.shape_cast %10 : vector<8x1xf32> to vector<8x1xf32>
    %12 = vector.broadcast %11 : vector<8x1xf32> to vector<8x16xf32>
    %13 = tpu.concatenate %3, %6, %9, %12 in 1 : vector<8x16xf32>, vector<8x16xf32>, vector<8x16xf32>, vector<8x16xf32> -> vector<8x64xf32>
    %c0_1 = arith.constant 0 : index
    %c0_2 = arith.constant 0 : index
    %14 = vector.load %arg2[%c0_1, %c0_2] : memref<1x64xf32, #tpu.memory_space<vmem>>, vector<1x64xf32>
    %15 = vector.broadcast %14 : vector<1x64xf32> to vector<8x64xf32>
    %16 = arith.mulf %13, %15 : vector<8x64xf32>
    %c0_3 = arith.constant 0 : index
    %c0_4 = arith.constant 0 : index
    %17 = vector.load %arg3[%c0_3, %c0_4] : memref<1x64xf32, #tpu.memory_space<vmem>>, vector<1x64xf32>
    %18 = vector.broadcast %17 : vector<1x64xf32> to vector<8x64xf32>
    %19 = arith.addf %16, %18 : vector<8x64xf32>
    %c0_5 = arith.constant 0 : index
    %c0_6 = arith.constant 0 : index
    %20 = vector.load %arg4[%c0_5, %c0_6] : memref<1x64xf32, #tpu.memory_space<vmem>>, vector<1x64xf32>
    %21 = math.sin %19 : vector<8x64xf32>
    %22 = vector.broadcast %20 : vector<1x64xf32> to vector<8x64xf32>
    %23 = arith.mulf %22, %21 : vector<8x64xf32>
    %c0_7 = arith.constant 0 : index
    %c0_8 = arith.constant 0 : index
    %24 = vector.load %arg5[%c0_7, %c0_8] : memref<8x64xf32, #tpu.memory_space<vmem>>, vector<8x64xf32>
    tpu.vector_store %arg5[%c0_7, %c0_8], %23 {strides = array<i32>} : memref<8x64xf32, #tpu.memory_space<vmem>>, vector<8x64xf32>,
    return
  }
  func.func @transform_0(%arg0: i32) -> (i32, i32) {
    %c0_i32 = arith.constant 0 : i32
    %c0_i32_0 = arith.constant 0 : i32
    return %arg0, %c0_i32 : i32, i32
  }
  func.func @transform_1(%arg0: i32) -> (i32, i32) {
    %c0_i32 = arith.constant 0 : i32
    %c0_i32_0 = arith.constant 0 : i32
    %c0_i32_1 = arith.constant 0 : i32
    return %c0_i32, %c0_i32_0 : i32, i32
  }
  func.func @transform_2(%arg0: i32) -> (i32, i32) {
    %c0_i32 = arith.constant 0 : i32
    %c0_i32_0 = arith.constant 0 : i32
    %c0_i32_1 = arith.constant 0 : i32
    return %c0_i32, %c0_i32_0 : i32, i32
  }
  func.func @transform_3(%arg0: i32) -> (i32, i32) {
    %c0_i32 = arith.constant 0 : i32
    %c0_i32_0 = arith.constant 0 : i32
    %c0_i32_1 = arith.constant 0 : i32
    return %c0_i32, %c0_i32_0 : i32, i32
  }
  func.func @transform_4(%arg0: i32) -> (i32, i32) {
    %c0_i32 = arith.constant 0 : i32
    %c0_i32_0 = arith.constant 0 : i32
    return %arg0, %c0_i32 : i32, i32
  }
}

</mosaic_0001>

<llo_original>
// kernel: tpu_custom_call.1
$region0: #{tpu_custom_call.1}
  #allocation0 [shape = 'u32[]', space=smem, size = 0x4, offset = 0x4, fixed_abs, tag = 'smem constant byte address 0x4 - core index']
  #allocation1 [shape = 'u32[144,128]{1,0:T(1,128)}', space=vmem, size = 0x12000, scoped, tag = 'internal scratch']
  %s0 = inlined_call_operand.vmem [shape: f32[16,4], index: 0, kind: input, shape index: {}]
  %s1 = inlined_call_operand.vmem [shape: f32[1,64], index: 1, kind: input, shape index: {}]
  %s2 = inlined_call_operand.vmem [shape: f32[1,64], index: 2, kind: input, shape index: {}]
  %s3 = inlined_call_operand.vmem [shape: f32[1,64], index: 3, kind: input, shape index: {}]
  %s4 = inlined_call_operand.hbm [shape: f32[16,64], index: 4, kind: output, shape index: {}]
  %s5 = sld [smem:[#allocation0]]
  $region49: #{tpu_custom_call.1} parent=0
    _
  %s7 = ssub.s32 1, %s5
  %s8 = scalar_select 0, %s7, %s5
  $region1: #{tpu_custom_call.1} parent=0
    #allocation2 [shape = 'u8[8192]{0}', space=vmem, size = 0x2000, scoped, tag = 'output window, operand 0']
    #allocation3 [shape = 's32[2]{0}', space=sflag, size = 0x8, scoped, tag = 'scoped memory for tpu_custom_call.1']
    %9 = vsyncpa [#allocation3], 0
    %s10 = scalar_lea.sflag [#allocation3], 1
    %11 = vsyncpa %s10, 0
    loop: start=0, step=1, limit=4
    $region2: #{tpu_custom_call.1} parent=1 // loop_pre_header
      _
    $region3: #{tpu_custom_call.1} parent=1 // loop_header
      %s13 = sphi 0, %s17
      %p14 = scmp.ge.s32.totalorder %s13, 4
      %s23 = sphi 0, %s25
      %s26 = sphi 0, %s23
      %s27 = sphi 0, %s26
      %s43 = sphi 0, %s27
      %s47 = sphi 0, %s47
      %s49 = sphi 0, %s47
      %s50 = sphi 0, %s49
      %s64 = sphi 0, %s50
      %s68 = sphi 0, %s68
      %s70 = sphi 0, %s68
      %s71 = sphi 0, %s70
      %s85 = sphi 0, %s71
      %s89 = sphi 0, %s89
      %s91 = sphi 0, %s89
      %s92 = sphi 0, %s91
      %s106 = sphi 0, %s92
      %s112 = sphi 0, %s114
      %s115 = sphi 0, %s112
      %s116 = sphi 0, %s115
      %s132 = sphi 0, %s116
    $region4: #{tpu_custom_call.1} parent=1 // loop_header_branch
      %16 = sbr.rel (%p14) target = $region8
    $region5: #{tpu_custom_call.1} parent=1 // loop_body
      %s18 = ssub.s32 %s13, 1
      %s19 = ssub.s32 %s13, 2
      %s20 = sadd.s32 %s13, 1
      %s21 = ssub.s32 %s13, %s20
      %p22 = scmp.eq.s32.totalorder %s21, 0
      %s24 = sadd.s32 %s23, 1
      %s25 = scalar_select %p22, %s23, %s24
      %p28 = pneg %p22
      %p29 = scmp.eq.s32.totalorder %s13, 1
      %p30 = por %p28, %p29
      %p31 = scmp.ne.s32.totalorder %s23, %s26
      %p32 = scmp.eq.s32.totalorder %s13, 0
      %p33 = por %p31, %p32
      %p34 = scmp.ne.s32.totalorder %s23, %s26
      %p35 = scmp.eq.s32.totalorder %s18, 1
      %p36 = por %p34, %p35
      %p37 = scmp.ne.s32.totalorder %s26, %s27
      %p38 = scmp.eq.s32.totalorder %s18, 0
      %p39 = por %p37, %p38
      %p40 = scmp.ne.s32.totalorder %s26, %s27
      %p41 = scmp.eq.s32.totalorder %s19, 1
      %p42 = por %p40, %p41
      %p44 = scmp.ne.s32.totalorder %s27, %s43
      %p45 = scmp.eq.s32.totalorder %s19, 0
      %p46 = por %p44, %p45
      %s48 = sadd.s32 %s47, 1
      %p51 = scmp.eq.s32.totalorder %s13, 1
      %p52 = scmp.ne.s32.totalorder %s47, %s49
      %p53 = scmp.eq.s32.totalorder %s13, 0
      %p54 = por %p52, %p53
      %p55 = scmp.ne.s32.totalorder %s47, %s49
      %p56 = scmp.eq.s32.totalorder %s18, 1
      %p57 = por %p55, %p56
      %p58 = scmp.ne.s32.totalorder %s49, %s50
      %p59 = scmp.eq.s32.totalorder %s18, 0
      %p60 = por %p58, %p59
      %p61 = scmp.ne.s32.totalorder %s49, %s50
      %p62 = scmp.eq.s32.totalorder %s19, 1
      %p63 = por %p61, %p62
      %p65 = scmp.ne.s32.totalorder %s50, %s64
      %p66 = scmp.eq.s32.totalorder %s19, 0
      %p67 = por %p65, %p66
      %s69 = sadd.s32 %s68, 1
      %p72 = scmp.eq.s32.totalorder %s13, 1
      %p73 = scmp.ne.s32.totalorder %s68, %s70
      %p74 = scmp.eq.s32.totalorder %s13, 0
      %p75 = por %p73, %p74
      %p76 = scmp.ne.s32.totalorder %s68, %s70
      %p77 = scmp.eq.s32.totalorder %s18, 1
      %p78 = por %p76, %p77
      %p79 = scmp.ne.s32.totalorder %s70, %s71
      %p80 = scmp.eq.s32.totalorder %s18, 0
      %p81 = por %p79, %p80
      %p82 = scmp.ne.s32.totalorder %s70, %s71
      %p83 = scmp.eq.s32.totalorder %s19, 1
      %p84 = por %p82, %p83
      %p86 = scmp.ne.s32.totalorder %s71, %s85
      %p87 = scmp.eq.s32.totalorder %s19, 0
      %p88 = por %p86, %p87
      %s90 = sadd.s32 %s89, 1
      %p93 = scmp.eq.s32.totalorder %s13, 1
      %p94 = scmp.ne.s32.totalorder %s89, %s91
      %p95 = scmp.eq.s32.totalorder %s13, 0
      %p96 = por %p94, %p95
      %p97 = scmp.ne.s32.totalorder %s89, %s91
      %p98 = scmp.eq.s32.totalorder %s18, 1
      %p99 = por %p97, %p98
      %p100 = scmp.ne.s32.totalorder %s91, %s92
      %p101 = scmp.eq.s32.totalorder %s18, 0
      %p102 = por %p100, %p101
      %p103 = scmp.ne.s32.totalorder %s91, %s92
      %p104 = scmp.eq.s32.totalorder %s19, 1
      %p105 = por %p103, %p104
      %p107 = scmp.ne.s32.totalorder %s92, %s106
      %p108 = scmp.eq.s32.totalorder %s19, 0
      %p109 = por %p107, %p108
      %s110 = ssub.s32 %s13, %s20
      %p111 = scmp.eq.s32.totalorder %s110, 0
      %s113 = sadd.s32 %s112, 1
      %s114 = scalar_select %p111, %s112, %s113
      %p117 = pneg %p111
      %p118 = scmp.eq.s32.totalorder %s13, 1
      %p119 = por %p117, %p118
      %p120 = scmp.ne.s32.totalorder %s112, %s115
      %p121 = scmp.eq.s32.totalorder %s13, 0
      %p122 = por %p120, %p121
      %p123 = scmp.ne.s32.totalorder %s112, %s115
      %p124 = scmp.eq.s32.totalorder %s18, 1
      %p125 = por %p123, %p124
      %p126 = scmp.ne.s32.totalorder %s115, %s116
      %p127 = scmp.eq.s32.totalorder %s18, 0
      %p128 = por %p126, %p127
      %p129 = scmp.ne.s32.totalorder %s115, %s116
      %p130 = scmp.eq.s32.totalorder %s19, 1
      %p131 = por %p129, %p130
      %p133 = scmp.ne.s32.totalorder %s116, %s132
      %p134 = scmp.eq.s32.totalorder %s19, 0
      %p135 = por %p133, %p134
      %p136 = scmp.le.s32.totalorder 1, %s13
      %p137 = scmp.lt.s32.totalorder %s13, 3
      %p138 = pnand %p136, %p137
      %p139 = pneg %p138
      // Predicated region
      $region9: #{tpu_custom_call.1} parent=5 // pred_check
        _
      $region10: #{tpu_custom_call.1} parent=5 // pred_check_branch
        %141 = sbr.rel (%p138) target = $region12
      $region11: #{tpu_custom_call.1} parent=5 // pred_region
        %s142 = ssub.s32 %s13, 1
        // Predicated region
        $region13: #{tpu_custom_call.1} parent=11 // pred_check
          %p143 = pneg %p60
        $region14: #{tpu_custom_call.1} parent=11 // pred_check_branch
          %145 = sbr.rel (%p143) target = $region16
        $region15: #{tpu_custom_call.1} parent=11 // pred_region
          _
        $region16: #{tpu_custom_call.1} parent=11 // pred_fallthru
          _
        // Predicated region
        $region17: #{tpu_custom_call.1} parent=11 // pred_check
          %p146 = pneg %p81
        $region18: #{tpu_custom_call.1} parent=11 // pred_check_branch
          %148 = sbr.rel (%p146) target = $region20
        $region19: #{tpu_custom_call.1} parent=11 // pred_region
          _
        $region20: #{tpu_custom_call.1} parent=11 // pred_fallthru
          _
        // Predicated region
        $region21: #{tpu_custom_call.1} parent=11 // pred_check
          %p149 = pneg %p102
        $region22: #{tpu_custom_call.1} parent=11 // pred_check_branch
          %151 = sbr.rel (%p149) target = $region24
        $region23: #{tpu_custom_call.1} parent=11 // pred_region
          _
        $region24: #{tpu_custom_call.1} parent=11 // pred_fallthru
          _
      $region12: #{tpu_custom_call.1} parent=5 // pred_fallthru
        _
      %p152 = scmp.lt.s32.totalorder %s13, 2
      // Predicated region
      $region25: #{tpu_custom_call.1} parent=5 // pred_check
        %p153 = pneg %p152
      $region26: #{tpu_custom_call.1} parent=5 // pred_check_branch
        %155 = sbr.rel (%p153) target = $region28
      $region27: #{tpu_custom_call.1} parent=5 // pred_region
        // Predicated region
        $region29: #{tpu_custom_call.1} parent=27 // pred_check
          %p156 = pneg %p33
        $region30: #{tpu_custom_call.1} parent=27 // pred_check_branch
          %158 = sbr.rel (%p156) target = $region32
        $region31: #{tpu_custom_call.1} parent=27 // pred_region
          %p159 = scmp.lt.s32.totalorder %s13, 1
          %s160 = scalar_select %p159, %s13, 1
          %s161 = smul.addr %s160, 8
          %s162 = scalar_lea.vmem %s0, %s161
        $region32: #{tpu_custom_call.1} parent=27 // pred_fallthru
          _
      $region28: #{tpu_custom_call.1} parent=5 // pred_fallthru
        _
      %p163 = scmp.le.s32.totalorder 1, %s13
      %p164 = scmp.lt.s32.totalorder %s13, 3
      %p165 = pnand %p163, %p164
      %p166 = pneg %p165
      // Predicated region
      $region33: #{tpu_custom_call.1} parent=5 // pred_check
        _
      $region34: #{tpu_custom_call.1} parent=5 // pred_check_branch
        %168 = sbr.rel (%p165) target = $region36
      $region35: #{tpu_custom_call.1} parent=5 // pred_region
        %s169 = ssub.s32 %s13, 1
        %p170 = scmp.lt.s32.totalorder %s18, 1
        %s171 = scalar_select %p170, %s18, 1
        %s172 = smul.addr %s171, 8
        %s173 = scalar_lea.vmem %s0, %s172
        %p174 = pneg %p39
        %p175 = pneg %p36
        %p176 = pneg %p60
        %p177 = pneg %p57
        %p178 = pneg %p81
        %p179 = pneg %p78
        %p180 = pneg %p102
        %p181 = pneg %p99
        %p182 = pneg %p128
        %p183 = pneg %p125
        %s184 = sand.u32 %s115, 1
        %s185 = scalar_lea.sflag [#allocation3], %s184
        %s186 = sand.u32 %s115, 1
        %s187 = smul.addr %s186, 8
        %s188 = scalar_lea.vmem [#allocation2], %s187
        %p189 = scmp.lt.s32.totalorder %s18, 1
        %s190 = scalar_select %p189, %s18, 1
        %s191 = smul.addr %s190, 8
        %s192 = scalar_lea.vmem %s0, %s191
        %v193 = vld [vmem:[%s192] sm:$0xff]
        %195 = vset.pattern.permute.xlu0 0
        %196 = vperm.xlu0 %195, %v193
        %v197 = vpop.permute.xlu0 %196
        %199 = vset.pattern.permute.xlu0 1
        %200 = vperm.xlu0 %199, %v193
        %v201 = vpop.permute.xlu0 %200
        %203 = vset.pattern.permute.xlu0 2
        %204 = vperm.xlu0 %203, %v193
        %v205 = vpop.permute.xlu0 %204
        %207 = vset.pattern.permute.xlu0 3
        %208 = vperm.xlu0 %207, %v193
        %v209 = vpop.permute.xlu0 %208
        %vm211 = vcmask 130048
        %v212 = vsel %vm211, %v197, %v201
        %vm213 = vcmask 261120
        %v214 = vsel %vm213, %v212, %v205
        %vm215 = vcmask 392192
        %v216 = vsel %vm215, %v214, %v209
        %v217 = vld [vmem:[%s1] sm:$0x1]
        %v219 = vlaneseq
        %v220 = vshrl.u32 %v219, 7
        %v221 = vsub.s32 0, %v220
        %v222 = vrot.slane %v217, %v221
        %v224 = vmul.f32 %v216, %v222
        %v225 = vld [vmem:[%s2] sm:$0x1]
        %v227 = vlaneseq
        %v228 = vshrl.u32 %v227, 7
        %v229 = vsub.s32 0, %v228
        %v230 = vrot.slane %v225, %v229
        %v232 = vadd.f32 %v224, %v230
        %v233 = vld [vmem:[%s3] sm:$0x1]
        %v234 = vand.u32 2147483647, %v232
        %vm235 = vcmp.le.f32.partialorder %v234, 0.7853982
        %vm236 = vcmp.lt.s32.totalorder %v232, 0
        %v237 = vand.u32 %v232, 2139095040
        %v238 = vshrl.u32 %v237, 23
        %v239 = vsub.s32 %v238, 127
        %v240 = vand.u32 2147483647, %v232
        %v241 = vand.u32 %v240, 8388607
        %v242 = vor.u32 %v241, 8388608
        %v243 = vsub.s32 0, %v242
        %v244 = vadd.s32 %v239, 1
        %vm245 = vcmp.gt.s32.totalorder %v244, 0
        %v246 = vsel %vm245, %v244, 0
        %v247 = vshrl.u32 %v246, 5
        %v248 = vand.u32 %v246, 31
        %v249 = vsub.s32 32, %v248
        %v250 = vshrl.u32 683565275, %v249
        %v251 = vshll.u32 683565275, %v248
        %v252 = vshrl.u32 2475754826, %v249
        %v253 = vor.u32 %v251, %v252
        %v254 = vshll.u32 2475754826, %v248
        %v255 = vshrl.u32 2131351028, %v249
        %v256 = vor.u32 %v254, %v255
        %v257 = vshll.u32 2131351028, %v248
        %v258 = vshrl.u32 2102212464, %v249
        %v259 = vor.u32 %v257, %v258
        %v260 = vshll.u32 2102212464, %v248
        %v261 = vshrl.u32 920167782, %v249
        %v262 = vor.u32 %v260, %v261
        %v263 = vshll.u32 920167782, %v248
        %v264 = vshrl.u32 1326507024, %v249
        %v265 = vor.u32 %v263, %v264
        %vm266 = vcmp.lt.s32.totalorder %v247, 1
        %vm267 = vcmp.lt.s32.totalorder %v247, 2
        %vm268 = vcmp.lt.s32.totalorder %v247, 3
        %vm269 = vcmp.lt.s32.totalorder %v247, 4
        %v270 = vsel %vm266, %v250, %v253
        %v271 = vsel %vm269, %v259, 2102212464
        %v272 = vsel %vm268, %v256, %v271
        %v273 = vsel %vm267, %v270, %v272
        %v274 = vsel %vm266, %v253, %v256
        %v275 = vsel %vm269, %v262, 920167782
        %v276 = vsel %vm268, %v259, %v275
        %v277 = vsel %vm267, %v274, %v276
        %v278 = vsel %vm266, %v256, %v259
        %v279 = vsel %vm269, %v265, 1326507024
        %v280 = vsel %vm268, %v262, %v279
        %v281 = vsel %vm267, %v278, %v280
        %v282 = vshll.u32 %v242, 8
        %v283 = vmul.u32.u64.compose %v282, %v281
        %v284 = vextract.low.u32 %v283
        %v285 = vextract.high.u32 %v283
        %v286 = vmul.u32.u64.compose %v282, %v277
        %v287 = vextract.low.u32 %v286
        %v288 = vextract.high.u32 %v286
        %v289 = vmul.u32 %v282, %v273
        %v290 = vadd.s32 %v285, %v287
        %vm291 = vc.u32 %v285, %v287
        %v292 = vadd.s32 %v288, 1
        %v293 = vsel %vm291, %v292, %v288
        %v294 = vadd.s32 %v289, %v293
        %v295 = vadd.s32 %v294, 536870912
        %v296 = vshrl.u32 %v295, 30
        %v297 = vshll.u32 %v296, 30
        %v298 = vsub.s32 %v294, %v297
        %vm299 = vcmp.lt.s32.totalorder %v298, 0
        %v300 = vsub.s32 0, %v298
        %v301 = vsel %vm299, %v300, %v298
        %v302 = vclz %v301
        %v303 = vsub.s32 %v302, 2
        %vm304 = vcmp.gt.s32.totalorder 0, %v303
        %v305 = vsel %vm304, 0, %v303
        %v306 = vsub.s32 32, %v305
        %v307 = vshll.u32 %v298, %v305
        %v308 = vshrl.u32 %v290, %v306
        %v309 = vor.u32 %v307, %v308
        %v310 = vsub.s32 4294967266, %v305
        %v311 = vadd.s32 %v310, 127
        %v312 = vshll.u32 %v311, 23
        %v313 = vor.u32 4788187, %v312
        %v314 = vand.u32 2147483647, %v313
        %v316 = vcvt.s32.f32 %v309
        %v317 = vmul.f32 %v316, %v314
        %v318 = vxor.u32 %v317, 2147483648
        %v319 = vsel %vm236, %v318, %v317
        %v320 = vsub.s32 4, %v296
        %v321 = vsel %vm236, %v320, %v296
        %v322 = vsel %vm235, %v232, %v319
        %v323 = vsel %vm235, 0, %v321
        %v324 = vcosq.f32.pop %v322
        %v325 = vsinq.f32.pop %v322
        %vm326 = vweird.f32 %v232
        %v327 = vadd.s32 %v323, 3
        %v328 = vand.u32 %v327, 3
        %vm329 = vcmp.lt.s32.totalorder %v328, 2
        %vm330 = vcmp.eq.s32.totalorder %v328, 0
        %v331 = vxor.u32 %v325, 2147483648
        %v332 = vsel %vm330, %v324, %v331
        %vm333 = vcmp.eq.s32.totalorder %v328, 2
        %v334 = vxor.u32 %v324, 2147483648
        %v335 = vsel %vm333, %v334, %v325
        %v336 = vsel %vm329, %v332, %v335
        %v337 = vsel %vm326, nan, %v336
        %v339 = vlaneseq
        %v340 = vshrl.u32 %v339, 7
        %v341 = vsub.s32 0, %v340
        %v342 = vrot.slane %v233, %v341
        %v344 = vmul.f32 %v342, %v337
        %vm345 = vcmask 523264
        %346 = vst.msk [vmem:[%s188] sm:$0xff] %vm345, %v344
        %s347 = sand.u32 %s115, 1
        %s348 = scalar_lea.sflag [#allocation3], %s347
        %s349 = sand.u32 %s115, 1
        %s350 = smul.addr %s349, 8
        %s351 = scalar_lea.vmem [#allocation2], %s350
        // Predicated region
        $region37: #{tpu_custom_call.1} parent=35 // pred_check
          %p352 = pneg %p125
        $region38: #{tpu_custom_call.1} parent=35 // pred_check_branch
          %354 = sbr.rel (%p352) target = $region40
        $region39: #{tpu_custom_call.1} parent=35 // pred_region
          %s356 = ssub.s32 128, 128
          %357 = vsyncadd %s348, %s356
          %s358 = smul.addr %s18, 128
          %s359 = scalar_lea.hbm %s4, %s358
          %s361 = sshll.u32 %s351, 4
          %s362 = int_to_ptr.vmem [resolvable:$true] %s361
          %364 = dma.vmem_to_hbm [thread:$0]  %s362, 128, %s359, %s348
        $region40: #{tpu_custom_call.1} parent=35 // pred_fallthru
          _
      $region36: #{tpu_custom_call.1} parent=5 // pred_fallthru
        _
      %p365 = scmp.le.s32.totalorder 2, %s13
      // Predicated region
      $region41: #{tpu_custom_call.1} parent=5 // pred_check
        %p366 = pneg %p365
      $region42: #{tpu_custom_call.1} parent=5 // pred_check_branch
        %368 = sbr.rel (%p366) target = $region44
      $region43: #{tpu_custom_call.1} parent=5 // pred_region
        %s369 = ssub.s32 %s13, 2
        // Predicated region
        $region45: #{tpu_custom_call.1} parent=43 // pred_check
          %p370 = pneg %p131
        $region46: #{tpu_custom_call.1} parent=43 // pred_check_branch
          %372 = sbr.rel (%p370) target = $region48
        $region47: #{tpu_custom_call.1} parent=43 // pred_region
          %s373 = sand.u32 %s116, 1
          %s374 = scalar_lea.sflag [#allocation3], %s373
          %s375 = sand.u32 %s116, 1
          %s376 = smul.addr %s375, 8
          %s377 = scalar_lea.vmem [#allocation2], %s376
          %378 = dma.done %s374, 128
        $region48: #{tpu_custom_call.1} parent=43 // pred_fallthru
          _
      $region44: #{tpu_custom_call.1} parent=5 // pred_fallthru
        _
    $region6: #{tpu_custom_call.1} parent=1 // loop_footer
      %s17 = sadd.s32 1, %s13
    $region7: #{tpu_custom_call.1} parent=1 // loop_footer_branch
      %12 = sbr.rel target = $region3
    $region8: #{tpu_custom_call.1} parent=1 // loop_exit
      _
    %379 = vsyncpa [#allocation3], 1
    %s380 = scalar_lea.sflag [#allocation3], 1
    %381 = vsyncpa %s380, 1

</llo_original>
